<compile_context>
chip_gen: v7x
topology: tpu7x:2x2x1
jax: 0.10.0
libtpu: 0.0.40
codegen_flags: <defaults>
</compile_context>

<pallas_src>
import math

import jax
import jax.numpy as jnp
from jax.experimental import pallas as pl
from jax.experimental.pallas import tpu as pltpu


def _round_up(x, m):
    return ((x + m - 1) // m) * m


def _critic_kernel(x_ref, w_ref, s_ref, out_ref, acc_ref):
    """One (B-tile, N-tile) grid step.

    x_ref:   (TB, TN, GF)  streamed node-feature block (GF = group * F)
    w_ref:   (2, F)        fused weights: row 0 = W1, row 1 = Wr
    s_ref:   (4,) in SMEM  scalars [b1, w2, b2, br]
    out_ref: (TB, 1)       per-row state value (written on last N step only)
    acc_ref: (TB, GF)      VMEM scratch: running max over node tiles
    """
    n = pl.program_id(1)

    @pl.when(n == 0)
    def _init():
        acc_ref[...] = jnp.full(acc_ref.shape, -jnp.inf, acc_ref.dtype)

    # Running max over this node tile (axis 1 of the block = node axis).
    acc_ref[...] = jnp.maximum(acc_ref[...], jnp.max(x_ref[...], axis=1))

    @pl.when(n == pl.num_programs(1) - 1)
    def _finalize():
        acc = acc_ref[...]                                   # (TB, GF)
        f = w_ref.shape[1]
        groups = acc.shape[1] // f
        # Fold the lane groups back to (TB, F): max over the g node slots.
        pooled = acc[:, 0:f]
        for i in range(1, groups):
            pooled = jnp.maximum(pooled, acc[:, i * f:(i + 1) * f])

        w = w_ref[...]                                       # (2, F)
        # VPU projections: broadcast-multiply + reduce over F (output width 1
        # each, so the MXU would be ~1/256 utilised -- skip it entirely).
        h_pre = jnp.sum(pooled * w[0:1, :], axis=-1, keepdims=True)   # (TB, 1)
        r_pre = jnp.sum(pooled * w[1:2, :], axis=-1, keepdims=True)   # (TB, 1)

        b1 = s_ref[0]
        w2 = s_ref[1]
        b2 = s_ref[2]
        br = s_ref[3]
        h = jnp.maximum(h_pre + b1, 0.0)                     # ReLU(Linear(F,1))
        out = w2 * h + b2 + (r_pre + br)                     # Linear(1,1) + residual
        out_ref[...] = out.astype(out_ref.dtype)


def critic_net_forward(state_feat, params):
    """state_feat: (B, N, F) float32 -> (B,) float32 state values."""
    B, N, F = state_feat.shape
    w1, b1, w2, b2, wr, br = params

    # ---- parameter packing: fused (2, F) weight + (4,) SMEM scalars --------
    w_fused = jnp.concatenate(
        [w1.reshape(1, F), wr.reshape(1, F)], axis=0).astype(jnp.float32)     # (2, F)
    scalars = jnp.stack(
        [b1.reshape(()), w2.reshape(()), b2.reshape(()), br.reshape(())]
    ).astype(jnp.float32)                                                      # (4,)

    # ---- lane-density grouping: fold g nodes into the lane dim -------------
    if F < 128 and 128 % F == 0:
        group = 128 // F           # e.g. F=32 -> g=4 -> 128-wide streamed rows
    else:
        group = 1                  # last dim stays = F (full-dim block is legal)
    GF = group * F

    # ---- tile sizes (~2 MiB per streamed block, double-buffered by Pallas) --
    TB = min(_round_up(B, 8), 128)                 # batch tile, multiple of 8
    Bp = _round_up(B, TB)

    target_block_bytes = 2 * 1024 * 1024
    tn = max(8, (target_block_bytes // (TB * GF * 4)) // 8 * 8)   # node-group tile
    NG = -(-N // group)                                           # ceil(N / group)
    tn = min(tn, _round_up(NG, 8))
    NGp = _round_up(NG, tn)

    # ---- pad (-inf never wins the max; padded B rows are sliced off) -------
    pad_n = NGp * group - N
    pad_b = Bp - B
    x = state_feat.astype(jnp.float32)
    if pad_n or pad_b:
        x = jnp.pad(x, ((0, pad_b), (0, pad_n), (0, 0)),
                    constant_values=-jnp.inf)
    x = x.reshape(Bp, NGp, GF)                     # contiguous reshape (free)

    grid = (Bp // TB, NGp // tn)                   # (B tiles, N tiles): N last

    out = pl.pallas_call(
        _critic_kernel,
        out_shape=jax.ShapeDtypeStruct((Bp, 1), jnp.float32),
        grid=grid,
        in_specs=[
            pl.BlockSpec((TB, tn, GF), lambda b, n: (b, n, 0)),   # streamed input
            pl.BlockSpec((2, F), lambda b, n: (0, 0)),            # fused weights
            pl.BlockSpec(memory_space=pltpu.MemorySpace.SMEM),    # scalar params
        ],
        out_specs=pl.BlockSpec((TB, 1), lambda b, n: (b, 0)),
        scratch_shapes=[pltpu.VMEM((TB, GF), jnp.float32)],       # running max
        compiler_params=pltpu.CompilerParams(
            dimension_semantics=("parallel", "arbitrary")),
    )(x, w_fused, scalars)

    return out[:B, 0]  # drop batch padding + squeeze(-1)


def init_params(key, feat_dim):
    """Deterministic init mimicking torch.nn.Linear defaults (uniform +-1/sqrt(fan_in))."""
    k1, k2, k3, k4, k5, k6 = jax.random.split(key, 6)
    lim_f = 1.0 / jnp.sqrt(jnp.float32(feat_dim))
    lim_1 = 1.0
    w1 = jax.random.uniform(k1, (feat_dim, 1), jnp.float32, -lim_f, lim_f)
    b1 = jax.random.uniform(k2, (1, 1), jnp.float32, -lim_f, lim_f)
    w2 = jax.random.uniform(k3, (1, 1), jnp.float32, -lim_1, lim_1)
    b2 = jax.random.uniform(k4, (1, 1), jnp.float32, -lim_1, lim_1)
    wr = jax.random.uniform(k5, (feat_dim, 1), jnp.float32, -lim_f, lim_f)
    br = jax.random.uniform(k6, (1, 1), jnp.float32, -lim_f, lim_f)
    return (w1, b1, w2, b2, wr, br)


def reference_forward(state_feat, params):
    """Pure-JAX reference of the same forward pass (for the correctness check)."""
    w1, b1, w2, b2, wr, br = params
    pooled = jnp.max(state_feat, axis=1)                              # (B, F)
    h = jnp.maximum(jnp.sum(pooled * w1[:, 0], axis=-1) + b1[0, 0], 0.0)
    y = h * w2[0, 0] + b2[0, 0]
    res = jnp.sum(pooled * wr[:, 0], axis=-1) + br[0, 0]
    return y + res                                                    # (B,)


if __name__ == "__main__":
    key = jax.random.PRNGKey(0)
    # (batch, num_nodes, state_feature_size): small primary shape + shapes that
    # exercise grouping fallback, padding, and multi-N-tile accumulation.
    shapes = [(8, 16, 32), (5, 37, 48), (64, 600, 32)]
    for (B, N, F) in shapes:
        key, k_x, k_p = jax.random.split(key, 3)
        state_feat = jax.random.normal(k_x, (B, N, F), dtype=jnp.float32)
        params = init_params(k_p, F)

        out = jax.block_until_ready(critic_net_forward(state_feat, params))
        ref = reference_forward(state_feat, params)

        assert out.shape == (B,), (out.shape, (B, N, F))
        assert jnp.allclose(out, ref, atol=1e-4, rtol=1e-4), (B, N, F, out, ref)

    print("KERNEL_OK")
</pallas_src>

<mosaic_0001>
module attributes {stable_mosaic.version = 11 : i64} {
  func.func @_critic_kernel(%arg0: i32, %arg1: i32, %arg2: memref<8x8x128xf32, #tpu.memory_space<vmem>>, %arg3: memref<2x32xf32, #tpu.memory_space<vmem>>, %arg4: memref<4xf32, #tpu.memory_space<smem>>, %arg5: memref<8x1xf32, #tpu.memory_space<vmem>>, %arg6: memref<8x128xf32, #tpu.memory_space<vmem>>) attributes {dimension_semantics = [#tpu.dimension_semantics<parallel>, #tpu.dimension_semantics<arbitrary>], iteration_bounds = array<i64: 1, 1>, scalar_prefetch = 0 : i64, scratch_operands = 1 : i64, tpu.core_type = #tpu.core_type<tc>, window_params = [{transform_indices = @transform_0, window_bounds = array<i64: 8, 8, 128>}, {pipeline_mode = #tpu.pipeline_mode<synchronous>, transform_indices = @transform_1, window_bounds = array<i64: 2, 32>}, {transform_indices = @transform_2, window_bounds = array<i64: 4>}, {transform_indices = @transform_3, window_bounds = array<i64: 8, 1>}]} {
    %c0_i32 = arith.constant 0 : i32
    %0 = arith.cmpi eq, %arg1, %c0_i32 : i32
    %1 = arith.extui %0 : i1 to i32
    %c0_i32_0 = arith.constant 0 : i32
    %2 = arith.cmpi ne, %1, %c0_i32_0 : i32
    scf.if %2 {
      %cst_9 = arith.constant 0xFF800000 : f32
      %11 = vector.broadcast %cst_9 : f32 to vector<8x128xf32>
      %c0_10 = arith.constant 0 : index
      %c0_11 = arith.constant 0 : index
      %12 = vector.load %arg6[%c0_10, %c0_11] : memref<8x128xf32, #tpu.memory_space<vmem>>, vector<8x128xf32>
      tpu.vector_store %arg6[%c0_10, %c0_11], %11 {strides = array<i32>} : memref<8x128xf32, #tpu.memory_space<vmem>>, vector<8x128xf32>,
    } else {
    }
    %c0 = arith.constant 0 : index
    %c0_1 = arith.constant 0 : index
    %3 = vector.load %arg6[%c0, %c0_1] : memref<8x128xf32, #tpu.memory_space<vmem>>, vector<8x128xf32>
    %c0_2 = arith.constant 0 : index
    %c0_3 = arith.constant 0 : index
    %c0_4 = arith.constant 0 : index
    %4 = vector.load %arg2[%c0_2, %c0_3, %c0_4] : memref<8x8x128xf32, #tpu.memory_space<vmem>>, vector<8x8x128xf32>
    %cst = arith.constant dense<0xFF800000> : vector<8x128xf32>
    %5 = vector.multi_reduction <maximumf>, %4, %cst [1] : vector<8x8x128xf32> to vector<8x128xf32>
    %6 = arith.maximumf %3, %5 : vector<8x128xf32>
    %c0_5 = arith.constant 0 : index
    %c0_6 = arith.constant 0 : index
    %7 = vector.load %arg6[%c0_5, %c0_6] : memref<8x128xf32, #tpu.memory_space<vmem>>, vector<8x128xf32>
    tpu.vector_store %arg6[%c0_5, %c0_6], %6 {strides = array<i32>} : memref<8x128xf32, #tpu.memory_space<vmem>>, vector<8x128xf32>,
    %c0_i32_7 = arith.constant 0 : i32
    %8 = arith.cmpi eq, %arg1, %c0_i32_7 : i32
    %9 = arith.extui %8 : i1 to i32
    %c0_i32_8 = arith.constant 0 : i32
    %10 = arith.cmpi ne, %9, %c0_i32_8 : i32
    scf.if %10 {
      %c0_9 = arith.constant 0 : index
      %c0_10 = arith.constant 0 : index
      %11 = vector.load %arg6[%c0_9, %c0_10] : memref<8x128xf32, #tpu.memory_space<vmem>>, vector<8x128xf32>
      %12 = vector.extract_strided_slice %11 {offsets = [0, 0], sizes = [8, 32], strides = [1, 1]} : vector<8x128xf32> to vector<8x32xf32>
      %13 = vector.extract_strided_slice %11 {offsets = [0, 32], sizes = [8, 32], strides = [1, 1]} : vector<8x128xf32> to vector<8x32xf32>
      %14 = arith.maximumf %12, %13 : vector<8x32xf32>
      %15 = vector.extract_strided_slice %11 {offsets = [0, 64], sizes = [8, 32], strides = [1, 1]} : vector<8x128xf32> to vector<8x32xf32>
      %16 = arith.maximumf %14, %15 : vector<8x32xf32>
      %17 = vector.extract_strided_slice %11 {offsets = [0, 96], sizes = [8, 32], strides = [1, 1]} : vector<8x128xf32> to vector<8x32xf32>
      %18 = arith.maximumf %16, %17 : vector<8x32xf32>
      %c0_11 = arith.constant 0 : index
      %c0_12 = arith.constant 0 : index
      %19 = vector.load %arg3[%c0_11, %c0_12] : memref<2x32xf32, #tpu.memory_space<vmem>>, vector<2x32xf32>
      %20 = vector.extract_strided_slice %19 {offsets = [0, 0], sizes = [1, 32], strides = [1, 1]} : vector<2x32xf32> to vector<1x32xf32>
      %21 = vector.broadcast %20 : vector<1x32xf32> to vector<8x32xf32>
      %22 = arith.mulf %18, %21 : vector<8x32xf32>
      %cst_13 = arith.constant dense<0.000000e+00> : vector<8xf32>
      %23 = vector.multi_reduction <add>, %22, %cst_13 [1] : vector<8x32xf32> to vector<8xf32>
      %24 = vector.shape_cast %23 : vector<8xf32> to vector<8x1xf32>
      %25 = vector.extract_strided_slice %19 {offsets = [1, 0], sizes = [1, 32], strides = [1, 1]} : vector<2x32xf32> to vector<1x32xf32>
      %26 = vector.broadcast %25 : vector<1x32xf32> to vector<8x32xf32>
      %27 = arith.mulf %18, %26 : vector<8x32xf32>
      %cst_14 = arith.constant dense<0.000000e+00> : vector<8xf32>
      %28 = vector.multi_reduction <add>, %27, %cst_14 [1] : vector<8x32xf32> to vector<8xf32>
      %29 = vector.shape_cast %28 : vector<8xf32> to vector<8x1xf32>
      %c0_15 = arith.constant 0 : index
      %30 = memref.load %arg4[%c0_15] : memref<4xf32, #tpu.memory_space<smem>>
      %c1 = arith.constant 1 : index
      %31 = memref.load %arg4[%c1] : memref<4xf32, #tpu.memory_space<smem>>
      %c2 = arith.constant 2 : index
      %32 = memref.load %arg4[%c2] : memref<4xf32, #tpu.memory_space<smem>>
      %c3 = arith.constant 3 : index
      %33 = memref.load %arg4[%c3] : memref<4xf32, #tpu.memory_space<smem>>
      %34 = vector.broadcast %30 : f32 to vector<8x1xf32>
      %35 = arith.addf %24, %34 : vector<8x1xf32>
      %cst_16 = arith.constant 0.000000e+00 : f32
      %36 = vector.broadcast %cst_16 : f32 to vector<8x1xf32>
      %37 = arith.maximumf %35, %36 : vector<8x1xf32>
      %38 = vector.broadcast %31 : f32 to vector<8x1xf32>
      %39 = arith.mulf %38, %37 : vector<8x1xf32>
      %40 = vector.broadcast %32 : f32 to vector<8x1xf32>
      %41 = arith.addf %39, %40 : vector<8x1xf32>
      %42 = vector.broadcast %33 : f32 to vector<8x1xf32>
      %43 = arith.addf %29, %42 : vector<8x1xf32>
      %44 = arith.addf %41, %43 : vector<8x1xf32>
      %c0_17 = arith.constant 0 : index
      %c0_18 = arith.constant 0 : index
      %45 = vector.load %arg5[%c0_17, %c0_18] : memref<8x1xf32, #tpu.memory_space<vmem>>, vector<8x1xf32>
      tpu.vector_store %arg5[%c0_17, %c0_18], %44 {strides = array<i32>} : memref<8x1xf32, #tpu.memory_space<vmem>>, vector<8x1xf32>,
    } else {
    }
    return
  }
  func.func @transform_0(%arg0: i32, %arg1: i32) -> (i32, i32, i32) {
    %c0_i32 = arith.constant 0 : i32
    %c0_i32_0 = arith.constant 0 : i32
    return %arg0, %arg1, %c0_i32 : i32, i32, i32
  }
  func.func @transform_1(%arg0: i32, %arg1: i32) -> (i32, i32) {
    %c0_i32 = arith.constant 0 : i32
    %c0_i32_0 = arith.constant 0 : i32
    %c0_i32_1 = arith.constant 0 : i32
    return %c0_i32, %c0_i32_0 : i32, i32
  }
  func.func @transform_2(%arg0: i32, %arg1: i32) -> i32 {
    %c0_i32 = arith.constant 0 : i32
    %c0_i32_0 = arith.constant 0 : i32
    return %c0_i32 : i32
  }
  func.func @transform_3(%arg0: i32, %arg1: i32) -> (i32, i32) {
    %c0_i32 = arith.constant 0 : i32
    %c0_i32_0 = arith.constant 0 : i32
    return %arg0, %c0_i32 : i32, i32
  }
}

</mosaic_0001>

<llo_original>
// kernel: tpu_custom_call.1
$region0: #{tpu_custom_call.1}
  #allocation0 [shape = 'u32[]', space=smem, size = 0x4, offset = 0x4, fixed_abs, tag = 'smem constant byte address 0x4 - core index']
  #allocation1 [shape = 'u32[144,128]{1,0:T(1,128)}', space=vmem, size = 0x12000, scoped, tag = 'internal scratch']
  #allocation2 [shape = 'f32[8,128]{1,0:T(8,128)}', space=vmem, size = 0x1000, scoped, tag = 'scratch operand']
  %s0 = inlined_call_operand.hbm [shape: f32[8,8,128], index: 0, kind: input, shape index: {}]
  %s1 = inlined_call_operand.vmem [shape: f32[2,32], index: 1, kind: input, shape index: {}]
  %s2 = inlined_call_operand.vmem [shape: f32[4], index: 2, kind: input, shape index: {}]
  %s3 = inlined_call_operand.vmem [shape: f32[8,1], index: 3, kind: output, shape index: {}]
  %s4 = sld [smem:[#allocation0]]
  $region38: #{tpu_custom_call.1} parent=0
    _
  %s6 = ssub.s32 1, %s4
  %s7 = scalar_select 0, %s6, %s4
  $region1: #{tpu_custom_call.1} parent=0
    #allocation3 [shape = 'u8[32768]{0}', space=vmem, size = 0x8000, scoped, tag = 'input window, operand 0, single buffered']
    #allocation4 [shape = 's32[1]{0}', space=sflag, size = 0x4, scoped, tag = 'scoped memory for tpu_custom_call.1']
    #allocation5 [shape = 's32[1]{0}', space=sflag, size = 0x4, scoped, tag = 'scoped memory for tpu_custom_call.1']
    #allocation6 [shape = 'u8[512]{0}', space=smem, size = 0x200, scoped, tag = 'input window, operand 2, single buffered']
    %8 = vsyncpa [#allocation4], 0
    %9 = vsyncpa [#allocation5], 0
    // Predicated region
    $region2: #{tpu_custom_call.1} parent=1 // pred_check
      _
    $region3: #{tpu_custom_call.1} parent=1 // pred_check_branch
      %11 = sbr.rel (0) target = $region5
    $region4: #{tpu_custom_call.1} parent=1 // pred_region
      %s13 = ssub.s32 1024, 1024
      %14 = vsyncadd [#allocation4], %s13
      %s15 = sshll.u32 [#allocation3], 4
      %s16 = int_to_ptr.vmem [resolvable:$true] %s15
      %21 = dma.hbm_to_vmem [thread:$0]  %s0, 1024, %s16, [#allocation4], 128, 128, 8
    $region5: #{tpu_custom_call.1} parent=1 // pred_fallthru
      _
    // Predicated region
    $region6: #{tpu_custom_call.1} parent=1 // pred_check
      _
    $region7: #{tpu_custom_call.1} parent=1 // pred_check_branch
      %23 = sbr.rel (0) target = $region9
    $region8: #{tpu_custom_call.1} parent=1 // pred_region
      _
    $region9: #{tpu_custom_call.1} parent=1 // pred_fallthru
      _
    // Predicated region
    $region10: #{tpu_custom_call.1} parent=1 // pred_check
      _
    $region11: #{tpu_custom_call.1} parent=1 // pred_check_branch
      %25 = sbr.rel (0) target = $region13
    $region12: #{tpu_custom_call.1} parent=1 // pred_region
      %s27 = ssub.s32 16, 16
      %28 = vsyncadd [#allocation5], %s27
      %s30 = sshll.u32 %s2, 4
      %s31 = int_to_ptr.vmem [resolvable:$true] %s30
      %33 = dma.vmem_to_smem %s31, 16, [#allocation6], [#allocation5]
    $region13: #{tpu_custom_call.1} parent=1 // pred_fallthru
      _
    // Predicated region
    $region14: #{tpu_custom_call.1} parent=1 // pred_check
      _
    $region15: #{tpu_custom_call.1} parent=1 // pred_check_branch
      %35 = sbr.rel (0) target = $region17
    $region16: #{tpu_custom_call.1} parent=1 // pred_region
      %36 = dma.done [#allocation4], 1024
    $region17: #{tpu_custom_call.1} parent=1 // pred_fallthru
      _
    // Predicated region
    $region18: #{tpu_custom_call.1} parent=1 // pred_check
      _
    $region19: #{tpu_custom_call.1} parent=1 // pred_check_branch
      %38 = sbr.rel (0) target = $region21
    $region20: #{tpu_custom_call.1} parent=1 // pred_region
      %39 = dma.done [#allocation5], 16
    $region21: #{tpu_custom_call.1} parent=1 // pred_fallthru
      _
    %40 = sfence
    %p41 = scmp.eq.s32.totalorder 0, 0
    // Predicated region
    $region22: #{tpu_custom_call.1} parent=1 // pred_check
      %p42 = pneg %p41
    $region23: #{tpu_custom_call.1} parent=1 // pred_check_branch
      %44 = sbr.rel (%p42) target = $region25
    $region24: #{tpu_custom_call.1} parent=1 // pred_region
      %45 = vst [vmem:[#allocation2] sm:$0xff] -inf
    $region25: #{tpu_custom_call.1} parent=1 // pred_fallthru
      _
    %v46 = vld [vmem:[#allocation2] sm:$0xff]
    %v47 = vld [vmem:[#allocation3] sm:$0xff]
    %v48 = vld [vmem:[#allocation3 + $0x8] sm:$0xff]
    %v49 = vld [vmem:[#allocation3 + $0x10] sm:$0xff]
    %v50 = vld [vmem:[#allocation3 + $0x18] sm:$0xff]
    %v51 = vld [vmem:[#allocation3 + $0x20] sm:$0xff]
    %v52 = vld [vmem:[#allocation3 + $0x28] sm:$0xff]
    %v53 = vld [vmem:[#allocation3 + $0x30] sm:$0xff]
    %v54 = vld [vmem:[#allocation3 + $0x38] sm:$0xff]
    %v55 = vrot.slane %v47, 4
    %v56 = vmax.f32 %v47, %v55
    %v57 = vrot.slane %v56, 2
    %v58 = vmax.f32 %v56, %v57
    %v59 = vrot.slane %v58, 1
    %v60 = vmax.f32 %v58, %v59
    %v61 = vrot.slane %v48, 4
    %v62 = vmax.f32 %v48, %v61
    %v63 = vrot.slane %v62, 2
    %v64 = vmax.f32 %v62, %v63
    %v65 = vrot.slane %v64, 1
    %v66 = vmax.f32 %v64, %v65
    %v67 = vrot.slane %v49, 4
    %v68 = vmax.f32 %v49, %v67
    %v69 = vrot.slane %v68, 2
    %v70 = vmax.f32 %v68, %v69
    %v71 = vrot.slane %v70, 1
    %v72 = vmax.f32 %v70, %v71
    %v73 = vrot.slane %v50, 4
    %v74 = vmax.f32 %v50, %v73
    %v75 = vrot.slane %v74, 2
    %v76 = vmax.f32 %v74, %v75
    %v77 = vrot.slane %v76, 1
    %v78 = vmax.f32 %v76, %v77
    %v79 = vrot.slane %v51, 4
    %v80 = vmax.f32 %v51, %v79
    %v81 = vrot.slane %v80, 2
    %v82 = vmax.f32 %v80, %v81
    %v83 = vrot.slane %v82, 1
    %v84 = vmax.f32 %v82, %v83
    %v85 = vrot.slane %v52, 4
    %v86 = vmax.f32 %v52, %v85
    %v87 = vrot.slane %v86, 2
    %v88 = vmax.f32 %v86, %v87
    %v89 = vrot.slane %v88, 1
    %v90 = vmax.f32 %v88, %v89
    %v91 = vrot.slane %v53, 4
    %v92 = vmax.f32 %v53, %v91
    %v93 = vrot.slane %v92, 2
    %v94 = vmax.f32 %v92, %v93
    %v95 = vrot.slane %v94, 1
    %v96 = vmax.f32 %v94, %v95
    %v97 = vrot.slane %v54, 4
    %v98 = vmax.f32 %v54, %v97
    %v99 = vrot.slane %v98, 2
    %v100 = vmax.f32 %v98, %v99
    %v101 = vrot.slane %v100, 1
    %v102 = vmax.f32 %v100, %v101
    %vm111 = vcmask 1041409
    %v112 = vsel %vm111, %v66, %v60
    %vm113 = vcmask 1042434
    %v114 = vsel %vm113, %v72, %v112
    %vm115 = vcmask 1043459
    %v116 = vsel %vm115, %v78, %v114
    %vm117 = vcmask 1044484
    %v118 = vsel %vm117, %v84, %v116
    %vm119 = vcmask 1045509
    %v120 = vsel %vm119, %v90, %v118
    %vm121 = vcmask 1046534
    %v122 = vsel %vm121, %v96, %v120
    %vm123 = vcmask 1047559
    %v124 = vsel %vm123, %v102, %v122
    %v126 = vmax.f32 %v46, %v124
    %127 = vst [vmem:[#allocation2] sm:$0xff] %v126
    // Predicated region
    $region26: #{tpu_custom_call.1} parent=1 // pred_check
      %p128 = pneg %p41
    $region27: #{tpu_custom_call.1} parent=1 // pred_check_branch
      %130 = sbr.rel (%p128) target = $region29
    $region28: #{tpu_custom_call.1} parent=1 // pred_region
      %v131 = vld [vmem:[#allocation2] sm:$0xff]
      %133 = vrot.lane.b32.xlu0 %v131, 96
      %v134 = vpop.permute.xlu0 %133
      %v136 = vmax.f32 %v131, %v134
      %137 = vrot.lane.b32.xlu0 %v131, 64
      %v138 = vpop.permute.xlu0 %137
      %v140 = vmax.f32 %v136, %v138
      %141 = vrot.lane.b32.xlu0 %v131, 32
      %v142 = vpop.permute.xlu0 %141
      %v144 = vmax.f32 %v140, %v142
      %v145 = vld [vmem:[%s1] sm:$0x3]
      %v146 = vlaneseq
      %v147 = vshrl.u32 %v146, 7
      %v148 = vsub.s32 0, %v147
      %v149 = vrot.slane %v145, %v148
      %v150 = vmul.f32 %v144, %v149
      %vm151 = vcmask 261120
      %v152 = vsel %vm151, %v150, 0.0
      %153 = vadd.xlane.f32.xlu0 %v152
      %v154 = vpop.xlane.xlu0 %153
      %v155 = vlaneseq
      %v156 = vshrl.u32 %v155, 7
      %v157 = vsub.s32 1, %v156
      %v158 = vrot.slane %v145, %v157
      %v159 = vmul.f32 %v144, %v158
      %v160 = vsel %vm151, %v159, 0.0
      %161 = vadd.xlane.f32.xlu0 %v160
      %v162 = vpop.xlane.xlu0 %161
      %s163 = sld [smem:[#allocation6]]
      %s164 = sld [smem:[#allocation6 + $0x1]]
      %s165 = sld [smem:[#allocation6 + $0x2]]
      %s166 = sld [smem:[#allocation6 + $0x3]]
      %v167 = vstv %s163
      %v168 = vadd.f32 %v154, %v167
      %v169 = vmax.f32 %v168, 0.0
      %v170 = vstv %s164
      %v171 = vmul.f32 %v170, %v169
      %v172 = vstv %s165
      %v173 = vadd.f32 %v171, %v172
      %v174 = vstv %s166
      %v175 = vadd.f32 %v162, %v174
      %v176 = vadd.f32 %v173, %v175
      %vm177 = vcmask 7168
      %178 = vst.msk [vmem:[%s3] sm:$0xff] %vm177, %v176
    $region29: #{tpu_custom_call.1} parent=1 // pred_fallthru
      _
    // Predicated region
    $region30: #{tpu_custom_call.1} parent=1 // pred_check
      _
    $region31: #{tpu_custom_call.1} parent=1 // pred_check_branch
      %180 = sbr.rel (0) target = $region33
    $region32: #{tpu_custom_call.1} parent=1 // pred_region
      _
    $region33: #{tpu_custom_call.1} parent=1 // pred_fallthru
      _
    // Predicated region
    $region34: #{tpu_custom_call.1} parent=1 // pred_check
      _
    $region35: #{tpu_custom_call.1} parent=1 // pred_check_branch
      %182 = sbr.rel (0) target = $region37
    $region36: #{tpu_custom_call.1} parent=1 // pred_region
      _
    $region37: #{tpu_custom_call.1} parent=1 // pred_fallthru
      _
    %183 = vsyncpa [#allocation4], 1
    %184 = vsyncpa [#allocation5], 1

</llo_original>
